<compile_context>
chip_gen: v5e
topology: v5e:2x2
jax: 0.10.0
libtpu: 0.0.40
codegen_flags: <defaults>
</compile_context>

<pallas_src>
import functools

import jax
import jax.numpy as jnp
from jax.experimental import pallas as pl
from jax.experimental.pallas import tpu as pltpu


def _round_up(x, m):
    return (x + m - 1) // m * m


def _vmem_capacity_bytes():
    """Physical VMEM per core; conservative 64 MiB (v7x) if the query fails."""
    try:
        info = pltpu.get_tpu_info()
        cap = getattr(info, "vmem_capacity_bytes", None)
        if cap:
            return int(cap)
    except Exception:
        pass
    return 64 * 1024 * 1024


# --------------------------------------------------------------------------
# Fused path: all layer weights resident in VMEM, M-tiled streaming of x.
# --------------------------------------------------------------------------
def _fused_mlp_kernel(nlayers, compute_dtype, *refs):
    # refs = (x_ref, w0, b0, w1, b1, ..., w_{L-1}, b_{L-1}, out_ref)
    x_ref = refs[0]
    out_ref = refs[-1]
    params = refs[1:-1]

    h = x_ref[...].astype(compute_dtype)          # bf16 operand for the MXU
    for i in range(nlayers):
        w = params[2 * i][...]                    # already compute_dtype
        b = params[2 * i + 1][...]                # already f32 (1, out)
        acc = jnp.dot(h, w, preferred_element_type=jnp.float32) + b
        if i < nlayers - 1:
            acc = jnp.maximum(acc, 0.0)           # ReLU in f32 epilogue
            h = acc.astype(compute_dtype)
        else:
            h = acc
    out_ref[...] = h.astype(out_ref.dtype)


def _pick_tile_m(tile_m_req, n, est_fn, budget):
    tile_m = max(8, min(_round_up(tile_m_req, 8), 8 * pl.cdiv(n, 8)))
    if n >= 16:
        # keep >= 2 grid steps so v7x's two TensorCores both get work
        tile_m = min(tile_m, 8 * pl.cdiv(pl.cdiv(n, 2), 8))
    while tile_m > 8 and est_fn(tile_m) > budget:
        tile_m = max(8, (tile_m // 2 // 8) * 8)
    if tile_m >= n:
        tile_m = n                                # full-dim block: always legal
    return tile_m


def _run_fused(h, weights_c, biases_c, out_dtype, compute_dtype,
               tile_m_req, budget, vmem_cap, single_buffer_params):
    n, ninput = h.shape
    noutput = weights_c[-1].shape[1]
    nlayers = len(weights_c)

    param_buf = 1 if single_buffer_params else 2
    param_bytes = sum(w.size * w.dtype.itemsize + b.size * b.dtype.itemsize
                      for w, b in zip(weights_c, biases_c))
    x_itm = h.dtype.itemsize
    o_itm = jnp.dtype(out_dtype).itemsize
    cd_itm = jnp.dtype(compute_dtype).itemsize
    in_max = max(w.shape[0] for w in weights_c)
    pair_max = max(w.shape[0] + w.shape[1] for w in weights_c)

    def est(tm):
        io = 2 * tm * (ninput * x_itm + noutput * o_itm)        # double-buffered I/O
        live = tm * pair_max * 4 + tm * in_max * cd_itm          # f32 acc + bf16 copy
        return param_buf * param_bytes + io + live + (1 << 20)

    tile_m = _pick_tile_m(tile_m_req, n, est, budget)
    grid = (pl.cdiv(n, tile_m),)

    if single_buffer_params:
        def const_spec(shape):
            return pl.BlockSpec(shape, lambda i: (0, 0),
                                pipeline_mode=pl.Buffered(1))
    else:
        def const_spec(shape):
            return pl.BlockSpec(shape, lambda i: (0, 0))

    in_specs = [pl.BlockSpec((tile_m, ninput), lambda i: (i, 0))]
    flat_params = []
    for w, b in zip(weights_c, biases_c):
        in_specs.append(const_spec(w.shape))
        in_specs.append(const_spec(b.shape))
        flat_params.extend([w, b])
    out_spec = pl.BlockSpec((tile_m, noutput), lambda i: (i, 0))

    vmem_limit = int(min(max(est(tile_m) * 3 // 2, 32 * 1024 * 1024), vmem_cap))

    return pl.pallas_call(
        functools.partial(_fused_mlp_kernel, nlayers, compute_dtype),
        out_shape=jax.ShapeDtypeStruct((n, noutput), out_dtype),
        grid=grid,
        in_specs=in_specs,
        out_specs=out_spec,
        compiler_params=pltpu.CompilerParams(
            dimension_semantics=("parallel",),
            vmem_limit_bytes=vmem_limit),
    )(h, *flat_params)


# --------------------------------------------------------------------------
# Fallback path (very large nh): per-layer kernels, M and N tiled, weight
# streamed as a (K, tn) slab per grid step so weights need not be resident.
# --------------------------------------------------------------------------
def _linear_kernel(apply_relu, compute_dtype, x_ref, w_ref, b_ref, o_ref):
    acc = jnp.dot(x_ref[...].astype(compute_dtype), w_ref[...],
                  preferred_element_type=jnp.float32)
    acc = acc + b_ref[...]
    if apply_relu:
        acc = jnp.maximum(acc, 0.0)
    o_ref[...] = acc.astype(o_ref.dtype)


def _run_per_layer(h, weights_c, biases_c, out_dtype, compute_dtype,
                   tile_m_req, budget, vmem_cap):
    # TODO(synk): add a K-grid split with an f32 accumulator scratch for
    # layers whose single (K, tn) weight slab alone exceeds the VMEM budget.
    n = h.shape[0]
    nlayers = len(weights_c)
    cd_itm = jnp.dtype(compute_dtype).itemsize

    for li, (w, b) in enumerate(zip(weights_c, biases_c)):
        K, Nl = w.shape
        last = li == nlayers - 1
        o_dt = out_dtype if last else compute_dtype
        tn = Nl if Nl <= 256 else 256            # multiple of 128 or full dim
        h_itm = h.dtype.itemsize
        o_itm = jnp.dtype(o_dt).itemsize
        w_itm = w.dtype.itemsize

        def est(tm):
            return (2 * (tm * K * h_itm + K * tn * w_itm + tn * 4 + tm * tn * o_itm)
                    + tm * tn * 4 + tm * K * cd_itm + (1 << 20))

        tm = _pick_tile_m(tile_m_req, n, est, budget)
        grid = (pl.cdiv(n, tm), pl.cdiv(Nl, tn))
        vmem_limit = int(min(max(est(tm) * 3 // 2, 32 * 1024 * 1024), vmem_cap))

        h = pl.pallas_call(
            functools.partial(_linear_kernel, not last, compute_dtype),
            out_shape=jax.ShapeDtypeStruct((n, Nl), o_dt),
            grid=grid,
            in_specs=[
                pl.BlockSpec((tm, K), lambda i, j: (i, 0)),
                pl.BlockSpec((K, tn), lambda i, j: (0, j)),
                pl.BlockSpec((1, tn), lambda i, j: (0, j)),
            ],
            out_specs=pl.BlockSpec((tm, tn), lambda i, j: (i, j)),
            compiler_params=pltpu.CompilerParams(
                dimension_semantics=("parallel", "parallel"),
                vmem_limit_bytes=vmem_limit),
        )(h, w, b)
    return h


# --------------------------------------------------------------------------
# Public wrapper.
# --------------------------------------------------------------------------
def mlp_forward(x, weights, biases, *, tile_m=512,
                compute_dtype=jnp.bfloat16, force_per_layer=False):
    """Run the fused MLP.

    x: any shape flattenable to (-1, ninput).
    weights[i]: (in_i, out_i)  (PyTorch (out,in) pre-transposed), biases[i]: (out_i,).
    compute_dtype: MXU operand dtype (default bf16; pass jnp.float32 for full precision).
    """
    nlayers = len(weights)
    ninput = weights[0].shape[0]
    noutput = weights[-1].shape[1]

    h = x.reshape(-1, ninput)                    # x.view(-1, ninput)
    n = h.shape[0]
    out_dtype = x.dtype

    # One-time (hoisted) param prep: weights in the matmul dtype, f32 biases
    # as 2-D (1, out) tiles -> no per-grid-step casts inside the kernel.
    weights_c = [w.astype(compute_dtype) for w in weights]
    biases_c = [b.reshape(1, -1).astype(jnp.float32) for b in biases]

    vmem_cap = _vmem_capacity_bytes()
    budget = vmem_cap * 3 // 4                   # ~48 MiB v7x, ~96 MiB v5e/v6e

    # Feasibility of the fully-resident (fused) path, assuming worst-case
    # double-buffered params and the minimal tile_m = 8.
    param_bytes = sum(w.size * w.dtype.itemsize + b.size * b.dtype.itemsize
                      for w, b in zip(weights_c, biases_c))
    x_itm = h.dtype.itemsize
    o_itm = jnp.dtype(out_dtype).itemsize
    cd_itm = jnp.dtype(compute_dtype).itemsize
    in_max = max(w.shape[0] for w in weights_c)
    pair_max = max(w.shape[0] + w.shape[1] for w in weights_c)
    min_fused = (2 * param_bytes
                 + 2 * 8 * (ninput * x_itm + noutput * o_itm)
                 + 8 * (pair_max * 4 + in_max * cd_itm)
                 + (1 << 20))
    use_fused = (not force_per_layer) and min_fused <= budget

    if use_fused:
        try:
            out = _run_fused(h, weights_c, biases_c, out_dtype, compute_dtype,
                             tile_m, budget, vmem_cap, single_buffer_params=True)
            return jax.block_until_ready(out)
        except Exception:
            # pipeline_mode=pl.Buffered(1) unsupported on this jax build:
            # retry with default (double-buffered) constant blocks.
            return _run_fused(h, weights_c, biases_c, out_dtype, compute_dtype,
                              tile_m, budget, vmem_cap,
                              single_buffer_params=False)

    return _run_per_layer(h, weights_c, biases_c, out_dtype, compute_dtype,
                          tile_m, budget, vmem_cap)


def init_mlp_params(key, ninput, nh, noutput, nlayers):
    """Deterministic synthetic init matching the module's layer shapes.
    Weights are returned as (in, out) — i.e. PyTorch's (out, in) transposed."""
    if nlayers == 1:
        dims = [(ninput, noutput)]
    else:
        dims = [(ninput, nh)]
        dims += [(nh, nh)] * (nlayers - 2)
        dims += [(nh, noutput)]

    weights, biases = [], []
    for (fan_in, fan_out) in dims:
        key, kw, kb = jax.random.split(key, 3)
        bound = 1.0 / jnp.sqrt(fan_in)
        w = jax.random.uniform(kw, (fan_in, fan_out), jnp.float32,
                               minval=-bound, maxval=bound)
        b = jax.random.uniform(kb, (fan_out,), jnp.float32,
                               minval=-bound, maxval=bound)
        weights.append(w)
        biases.append(b)
    return weights, biases


if __name__ == "__main__":
    # x of shape (6, 5, 32) is view-ed to (30, 32) inside the forward — 30
    # rows exercises the ragged last M block (masked OOB store) path.
    ninput, nh, noutput, nlayers = 32, 64, 16, 3

    key = jax.random.PRNGKey(0)
    key, kx = jax.random.split(key)
    x = jax.random.normal(kx, (6, 5, ninput), jnp.float32)

    weights, biases = init_mlp_params(key, ninput, nh, noutput, nlayers)

    # Fused (primary) path and the per-layer fallback path.
    out = jax.block_until_ready(mlp_forward(x, weights, biases))
    out_pl = jax.block_until_ready(
        mlp_forward(x, weights, biases, force_per_layer=True))

    # Pure-JAX reference with the SAME precision policy (bf16 matmul
    # operands, f32 accumulate, f32 bias+ReLU, bf16 intermediates).
    h = x.reshape(-1, ninput).astype(jnp.bfloat16)
    for i in range(nlayers):
        acc = jnp.dot(h, weights[i].astype(jnp.bfloat16),
                      preferred_element_type=jnp.float32) + biases[i]
        if i < nlayers - 1:
            h = jnp.maximum(acc, 0.0).astype(jnp.bfloat16)
        else:
            h = acc
    ref = h.astype(x.dtype)

    assert out.shape == (30, noutput)
    assert out_pl.shape == (30, noutput)
    assert jnp.allclose(out, ref, atol=2e-3, rtol=2e-3), \
        float(jnp.max(jnp.abs(out - ref)))
    assert jnp.allclose(out_pl, ref, atol=2e-3, rtol=2e-3), \
        float(jnp.max(jnp.abs(out_pl - ref)))

    print("KERNEL_OK")
</pallas_src>

<mosaic_0001>
module attributes {stable_mosaic.version = 11 : i64} {
  func.func @_fused_mlp_kernel(%arg0: i32, %arg1: memref<16x32xf32, #tpu.memory_space<vmem>>, %arg2: memref<32x64xbf16, #tpu.memory_space<vmem>>, %arg3: memref<1x64xf32, #tpu.memory_space<vmem>>, %arg4: memref<64x64xbf16, #tpu.memory_space<vmem>>, %arg5: memref<1x64xf32, #tpu.memory_space<vmem>>, %arg6: memref<64x16xbf16, #tpu.memory_space<vmem>>, %arg7: memref<1x16xf32, #tpu.memory_space<vmem>>, %arg8: memref<16x16xf32, #tpu.memory_space<vmem>>) attributes {dimension_semantics = [#tpu.dimension_semantics<parallel>], iteration_bounds = array<i64: 2>, scalar_prefetch = 0 : i64, scratch_operands = 0 : i64, tpu.core_type = #tpu.core_type<tc>, window_params = [{transform_indices = @transform_0, window_bounds = array<i64: 16, 32>}, {pipeline_mode = #tpu.pipeline_mode<synchronous>, transform_indices = @transform_1, window_bounds = array<i64: 32, 64>}, {pipeline_mode = #tpu.pipeline_mode<synchronous>, transform_indices = @transform_2, window_bounds = array<i64: 1, 64>}, {pipeline_mode = #tpu.pipeline_mode<synchronous>, transform_indices = @transform_3, window_bounds = array<i64: 64, 64>}, {pipeline_mode = #tpu.pipeline_mode<synchronous>, transform_indices = @transform_4, window_bounds = array<i64: 1, 64>}, {pipeline_mode = #tpu.pipeline_mode<synchronous>, transform_indices = @transform_5, window_bounds = array<i64: 64, 16>}, {pipeline_mode = #tpu.pipeline_mode<synchronous>, transform_indices = @transform_6, window_bounds = array<i64: 1, 16>}, {transform_indices = @transform_7, window_bounds = array<i64: 16, 16>}]} {
    %c0 = arith.constant 0 : index
    %c0_0 = arith.constant 0 : index
    %0 = vector.load %arg1[%c0, %c0_0] : memref<16x32xf32, #tpu.memory_space<vmem>>, vector<16x32xf32>
    %1 = arith.truncf %0 : vector<16x32xf32> to vector<16x32xbf16>
    %c0_1 = arith.constant 0 : index
    %c0_2 = arith.constant 0 : index
    %2 = vector.load %arg2[%c0_1, %c0_2] : memref<32x64xbf16, #tpu.memory_space<vmem>>, vector<32x64xbf16>
    %c0_3 = arith.constant 0 : index
    %c0_4 = arith.constant 0 : index
    %3 = vector.load %arg3[%c0_3, %c0_4] : memref<1x64xf32, #tpu.memory_space<vmem>>, vector<1x64xf32>
    %cst = arith.constant dense<0.000000e+00> : vector<16x64xf32>
    %4 = tpu.matmul %1, %2, %cst {dimension_numbers = #tpu.dot_dimension_numbers<[1], [0], [0], [1], [0, 0, 1, 1], [], []>} : vector<16x32xbf16>, vector<32x64xbf16>, vector<16x64xf32> -> vector<16x64xf32>
    %5 = vector.broadcast %3 : vector<1x64xf32> to vector<16x64xf32>
    %6 = arith.addf %4, %5 : vector<16x64xf32>
    %cst_5 = arith.constant 0.000000e+00 : f32
    %7 = vector.broadcast %cst_5 : f32 to vector<16x64xf32>
    %8 = arith.maximumf %6, %7 : vector<16x64xf32>
    %9 = arith.truncf %8 : vector<16x64xf32> to vector<16x64xbf16>
    %c0_6 = arith.constant 0 : index
    %c0_7 = arith.constant 0 : index
    %10 = vector.load %arg4[%c0_6, %c0_7] : memref<64x64xbf16, #tpu.memory_space<vmem>>, vector<64x64xbf16>
    %c0_8 = arith.constant 0 : index
    %c0_9 = arith.constant 0 : index
    %11 = vector.load %arg5[%c0_8, %c0_9] : memref<1x64xf32, #tpu.memory_space<vmem>>, vector<1x64xf32>
    %cst_10 = arith.constant dense<0.000000e+00> : vector<16x64xf32>
    %12 = tpu.matmul %9, %10, %cst_10 {dimension_numbers = #tpu.dot_dimension_numbers<[1], [0], [0], [1], [0, 0, 1, 1], [], []>} : vector<16x64xbf16>, vector<64x64xbf16>, vector<16x64xf32> -> vector<16x64xf32>
    %13 = vector.broadcast %11 : vector<1x64xf32> to vector<16x64xf32>
    %14 = arith.addf %12, %13 : vector<16x64xf32>
    %cst_11 = arith.constant 0.000000e+00 : f32
    %15 = vector.broadcast %cst_11 : f32 to vector<16x64xf32>
    %16 = arith.maximumf %14, %15 : vector<16x64xf32>
    %17 = arith.truncf %16 : vector<16x64xf32> to vector<16x64xbf16>
    %c0_12 = arith.constant 0 : index
    %c0_13 = arith.constant 0 : index
    %18 = vector.load %arg6[%c0_12, %c0_13] : memref<64x16xbf16, #tpu.memory_space<vmem>>, vector<64x16xbf16>
    %c0_14 = arith.constant 0 : index
    %c0_15 = arith.constant 0 : index
    %19 = vector.load %arg7[%c0_14, %c0_15] : memref<1x16xf32, #tpu.memory_space<vmem>>, vector<1x16xf32>
    %cst_16 = arith.constant dense<0.000000e+00> : vector<16x16xf32>
    %20 = tpu.matmul %17, %18, %cst_16 {dimension_numbers = #tpu.dot_dimension_numbers<[1], [0], [0], [1], [0, 0, 1, 1], [], []>} : vector<16x64xbf16>, vector<64x16xbf16>, vector<16x16xf32> -> vector<16x16xf32>
    %21 = vector.broadcast %19 : vector<1x16xf32> to vector<16x16xf32>
    %22 = arith.addf %20, %21 : vector<16x16xf32>
    %c0_17 = arith.constant 0 : index
    %c0_18 = arith.constant 0 : index
    %23 = vector.load %arg8[%c0_17, %c0_18] : memref<16x16xf32, #tpu.memory_space<vmem>>, vector<16x16xf32>
    tpu.vector_store %arg8[%c0_17, %c0_18], %22 {strides = array<i32>} : memref<16x16xf32, #tpu.memory_space<vmem>>, vector<16x16xf32>,
    return
  }
  func.func @transform_0(%arg0: i32) -> (i32, i32) {
    %c0_i32 = arith.constant 0 : i32
    %c0_i32_0 = arith.constant 0 : i32
    return %arg0, %c0_i32 : i32, i32
  }
  func.func @transform_1(%arg0: i32) -> (i32, i32) {
    %c0_i32 = arith.constant 0 : i32
    %c0_i32_0 = arith.constant 0 : i32
    %c0_i32_1 = arith.constant 0 : i32
    return %c0_i32, %c0_i32_0 : i32, i32
  }
  func.func @transform_2(%arg0: i32) -> (i32, i32) {
    %c0_i32 = arith.constant 0 : i32
    %c0_i32_0 = arith.constant 0 : i32
    %c0_i32_1 = arith.constant 0 : i32
    return %c0_i32, %c0_i32_0 : i32, i32
  }
  func.func @transform_3(%arg0: i32) -> (i32, i32) {
    %c0_i32 = arith.constant 0 : i32
    %c0_i32_0 = arith.constant 0 : i32
    %c0_i32_1 = arith.constant 0 : i32
    return %c0_i32, %c0_i32_0 : i32, i32
  }
  func.func @transform_4(%arg0: i32) -> (i32, i32) {
    %c0_i32 = arith.constant 0 : i32
    %c0_i32_0 = arith.constant 0 : i32
    %c0_i32_1 = arith.constant 0 : i32
    return %c0_i32, %c0_i32_0 : i32, i32
  }
  func.func @transform_5(%arg0: i32) -> (i32, i32) {
    %c0_i32 = arith.constant 0 : i32
    %c0_i32_0 = arith.constant 0 : i32
    %c0_i32_1 = arith.constant 0 : i32
    return %c0_i32, %c0_i32_0 : i32, i32
  }
  func.func @transform_6(%arg0: i32) -> (i32, i32) {
    %c0_i32 = arith.constant 0 : i32
    %c0_i32_0 = arith.constant 0 : i32
    %c0_i32_1 = arith.constant 0 : i32
    return %c0_i32, %c0_i32_0 : i32, i32
  }
  func.func @transform_7(%arg0: i32) -> (i32, i32) {
    %c0_i32 = arith.constant 0 : i32
    %c0_i32_0 = arith.constant 0 : i32
    return %arg0, %c0_i32 : i32, i32
  }
}

module attributes {stable_mosaic.version = 11 : i64} {
  func.func @_fused_mlp_kernel(%arg0: i32, %arg1: memref<16x32xf32, #tpu.memory_space<vmem>>, %arg2: memref<32x64xbf16, #tpu.memory_space<vmem>>, %arg3: memref<1x64xf32, #tpu.memory_space<vmem>>, %arg4: memref<64x64xbf16, #tpu.memory_space<vmem>>, %arg5: memref<1x64xf32, #tpu.memory_space<vmem>>, %arg6: memref<64x16xbf16, #tpu.memory_space<vmem>>, %arg7: memref<1x16xf32, #tpu.memory_space<vmem>>, %arg8: memref<16x16xf32, #tpu.memory_space<vmem>>) attributes {dimension_semantics = [#tpu.dimension_semantics<parallel>], iteration_bounds = array<i64: 2>, scalar_prefetch = 0 : i64, scratch_operands = 0 : i64, tpu.core_type = #tpu.core_type<tc>, window_params = [{transform_indices = @transform_0, window_bounds = array<i64: 16, 32>}, {pipeline_mode = #tpu.pipeline_mode<synchronous>, transform_indices = @transform_1, window_bounds = array<i64: 32, 64>}, {pipeline_mode = #tpu.pipeline_mode<synchronous>, transform_indices = @transform_2, window_bounds = array<i64: 1, 64>}, {pipeline_mode = #tpu.pipeline_mode<synchronous>, transform_indices = @transform_3, window_bounds = array<i64: 64, 64>}, {pipeline_mode = #tpu.pipeline_mode<synchronous>, transform_indices = @transform_4, window_bounds = array<i64: 1, 64>}, {pipeline_mode = #tpu.pipeline_mode<synchronous>, transform_indices = @transform_5, window_bounds = array<i64: 64, 16>}, {pipeline_mode = #tpu.pipeline_mode<synchronous>, transform_indices = @transform_6, window_bounds = array<i64: 1, 16>}, {transform_indices = @transform_7, window_bounds = array<i64: 16, 16>}]} {
    %c0 = arith.constant 0 : index
    %c0_0 = arith.constant 0 : index
    %0 = vector.load %arg1[%c0, %c0_0] : memref<16x32xf32, #tpu.memory_space<vmem>>, vector<16x32xf32>
    %1 = arith.truncf %0 : vector<16x32xf32> to vector<16x32xbf16>
    %c0_1 = arith.constant 0 : index
    %c0_2 = arith.constant 0 : index
    %2 = vector.load %arg2[%c0_1, %c0_2] : memref<32x64xbf16, #tpu.memory_space<vmem>>, vector<32x64xbf16>
    %c0_3 = arith.constant 0 : index
    %c0_4 = arith.constant 0 : index
    %3 = vector.load %arg3[%c0_3, %c0_4] : memref<1x64xf32, #tpu.memory_space<vmem>>, vector<1x64xf32>
    %cst = arith.constant dense<0.000000e+00> : vector<16x64xf32>
    %4 = tpu.matmul %1, %2, %cst {dimension_numbers = #tpu.dot_dimension_numbers<[1], [0], [0], [1], [0, 0, 1, 1], [], []>} : vector<16x32xbf16>, vector<32x64xbf16>, vector<16x64xf32> -> vector<16x64xf32>
    %5 = vector.broadcast %3 : vector<1x64xf32> to vector<16x64xf32>
    %6 = arith.addf %4, %5 : vector<16x64xf32>
    %cst_5 = arith.constant 0.000000e+00 : f32
    %7 = vector.broadcast %cst_5 : f32 to vector<16x64xf32>
    %8 = arith.maximumf %6, %7 : vector<16x64xf32>
    %9 = arith.truncf %8 : vector<16x64xf32> to vector<16x64xbf16>
    %c0_6 = arith.constant 0 : index
    %c0_7 = arith.constant 0 : index
    %10 = vector.load %arg4[%c0_6, %c0_7] : memref<64x64xbf16, #tpu.memory_space<vmem>>, vector<64x64xbf16>
    %c0_8 = arith.constant 0 : index
    %c0_9 = arith.constant 0 : index
    %11 = vector.load %arg5[%c0_8, %c0_9] : memref<1x64xf32, #tpu.memory_space<vmem>>, vector<1x64xf32>
    %cst_10 = arith.constant dense<0.000000e+00> : vector<16x64xf32>
    %12 = tpu.matmul %9, %10, %cst_10 {dimension_numbers = #tpu.dot_dimension_numbers<[1], [0], [0], [1], [0, 0, 1, 1], [], []>} : vector<16x64xbf16>, vector<64x64xbf16>, vector<16x64xf32> -> vector<16x64xf32>
    %13 = vector.broadcast %11 : vector<1x64xf32> to vector<16x64xf32>
    %14 = arith.addf %12, %13 : vector<16x64xf32>
    %cst_11 = arith.constant 0.000000e+00 : f32
    %15 = vector.broadcast %cst_11 : f32 to vector<16x64xf32>
    %16 = arith.maximumf %14, %15 : vector<16x64xf32>
    %17 = arith.truncf %16 : vector<16x64xf32> to vector<16x64xbf16>
    %c0_12 = arith.constant 0 : index
    %c0_13 = arith.constant 0 : index
    %18 = vector.load %arg6[%c0_12, %c0_13] : memref<64x16xbf16, #tpu.memory_space<vmem>>, vector<64x16xbf16>
    %c0_14 = arith.constant 0 : index
    %c0_15 = arith.constant 0 : index
    %19 = vector.load %arg7[%c0_14, %c0_15] : memref<1x16xf32, #tpu.memory_space<vmem>>, vector<1x16xf32>
    %cst_16 = arith.constant dense<0.000000e+00> : vector<16x16xf32>
    %20 = tpu.matmul %17, %18, %cst_16 {dimension_numbers = #tpu.dot_dimension_numbers<[1], [0], [0], [1], [0, 0, 1, 1], [], []>} : vector<16x64xbf16>, vector<64x16xbf16>, vector<16x16xf32> -> vector<16x16xf32>
    %21 = vector.broadcast %19 : vector<1x16xf32> to vector<16x16xf32>
    %22 = arith.addf %20, %21 : vector<16x16xf32>
    %c0_17 = arith.constant 0 : index
    %c0_18 = arith.constant 0 : index
    %23 = vector.load %arg8[%c0_17, %c0_18] : memref<16x16xf32, #tpu.memory_space<vmem>>, vector<16x16xf32>
    tpu.vector_store %arg8[%c0_17, %c0_18], %22 {strides = array<i32>} : memref<16x16xf32, #tpu.memory_space<vmem>>, vector<16x16xf32>,
    return
  }
  func.func @transform_0(%arg0: i32) -> (i32, i32) {
    %c0_i32 = arith.constant 0 : i32
    %c0_i32_0 = arith.constant 0 : i32
    return %arg0, %c0_i32 : i32, i32
  }
  func.func @transform_1(%arg0: i32) -> (i32, i32) {
    %c0_i32 = arith.constant 0 : i32
    %c0_i32_0 = arith.constant 0 : i32
    %c0_i32_1 = arith.constant 0 : i32
    return %c0_i32, %c0_i32_0 : i32, i32
  }
  func.func @transform_2(%arg0: i32) -> (i32, i32) {
    %c0_i32 = arith.constant 0 : i32
    %c0_i32_0 = arith.constant 0 : i32
    %c0_i32_1 = arith.constant 0 : i32
    return %c0_i32, %c0_i32_0 : i32, i32
  }
  func.func @transform_3(%arg0: i32) -> (i32, i32) {
    %c0_i32 = arith.constant 0 : i32
    %c0_i32_0 = arith.constant 0 : i32
    %c0_i32_1 = arith.constant 0 : i32
    return %c0_i32, %c0_i32_0 : i32, i32
  }
  func.func @transform_4(%arg0: i32) -> (i32, i32) {
    %c0_i32 = arith.constant 0 : i32
    %c0_i32_0 = arith.constant 0 : i32
    %c0_i32_1 = arith.constant 0 : i32
    return %c0_i32, %c0_i32_0 : i32, i32
  }
  func.func @transform_5(%arg0: i32) -> (i32, i32) {
    %c0_i32 = arith.constant 0 : i32
    %c0_i32_0 = arith.constant 0 : i32
    %c0_i32_1 = arith.constant 0 : i32
    return %c0_i32, %c0_i32_0 : i32, i32
  }
  func.func @transform_6(%arg0: i32) -> (i32, i32) {
    %c0_i32 = arith.constant 0 : i32
    %c0_i32_0 = arith.constant 0 : i32
    %c0_i32_1 = arith.constant 0 : i32
    return %c0_i32, %c0_i32_0 : i32, i32
  }
  func.func @transform_7(%arg0: i32) -> (i32, i32) {
    %c0_i32 = arith.constant 0 : i32
    %c0_i32_0 = arith.constant 0 : i32
    return %arg0, %c0_i32 : i32, i32
  }
}

</mosaic_0001>

<llo_original>
// kernel: tpu_custom_call.1
$region0: #{tpu_custom_call.1}
  #allocation0 [shape = 'u32[]', space=smem, size = 0x4, offset = 0x4, fixed_abs, tag = 'smem constant byte address 0x4 - core index']
  #allocation1 [shape = 'u32[72,128]{1,0:T(1,128)}', space=vmem, size = 0x9000, scoped, tag = 'internal scratch']
  %s0 = inlined_call_operand.vmem [shape: f32[30,32], index: 0, kind: input, shape index: {}]
  %s1 = inlined_call_operand.hbm [shape: bf16[32,64], index: 1, kind: input, shape index: {}]
  %s2 = inlined_call_operand.vmem [shape: f32[1,64], index: 2, kind: input, shape index: {}]
  %s3 = inlined_call_operand.hbm [shape: bf16[64,64], index: 3, kind: input, shape index: {}]
  %s4 = inlined_call_operand.vmem [shape: f32[1,64], index: 4, kind: input, shape index: {}]
  %s5 = inlined_call_operand.vmem [shape: bf16[64,16], index: 5, kind: input, shape index: {}]
  %s6 = inlined_call_operand.vmem [shape: f32[1,16], index: 6, kind: input, shape index: {}]
  %s7 = inlined_call_operand.vmem [shape: f32[30,16], index: 7, kind: output, shape index: {}]
  %s8 = sld [smem:[#allocation0]]
  $region69: #{tpu_custom_call.1} parent=0
    _
  %s10 = ssub.s32 1, %s8
  %s11 = scalar_select 0, %s10, %s8
  $region1: #{tpu_custom_call.1} parent=0
    #allocation2 [shape = 'u8[8192]{0}', space=vmem, size = 0x2000, scoped, tag = 'input window, operand 1, single buffered']
    #allocation3 [shape = 's32[2]{0}', space=sflag, size = 0x8, scoped, tag = 'scoped memory for tpu_custom_call.1']
    #allocation4 [shape = 'u8[16384]{0}', space=vmem, size = 0x4000, scoped, tag = 'input window, operand 3, single buffered']
    #allocation5 [shape = 's32[1]{0}', space=sflag, size = 0x4, scoped, tag = 'scoped memory for tpu_custom_call.1']
    %12 = vsyncpa [#allocation3], 0
    %13 = vsyncpa [#allocation5], 0
    loop: start=0, step=1, limit=4
    $region2: #{tpu_custom_call.1} parent=1 // loop_pre_header
      _
    $region3: #{tpu_custom_call.1} parent=1 // loop_header
      %s15 = sphi 0, %s19
      %p16 = scmp.ge.s32.totalorder %s15, 4
      %s25 = sphi 0, %s27
      %s28 = sphi 0, %s25
      %s29 = sphi 0, %s28
      %s45 = sphi 0, %s29
      %s49 = sphi 0, %s49
      %s51 = sphi 0, %s49
      %s52 = sphi 0, %s51
      %s66 = sphi 0, %s52
      %s70 = sphi 0, %s70
      %s72 = sphi 0, %s70
      %s73 = sphi 0, %s72
      %s87 = sphi 0, %s73
      %s91 = sphi 0, %s91
      %s93 = sphi 0, %s91
      %s94 = sphi 0, %s93
      %s108 = sphi 0, %s94
      %s112 = sphi 0, %s112
      %s114 = sphi 0, %s112
      %s115 = sphi 0, %s114
      %s129 = sphi 0, %s115
      %s133 = sphi 0, %s133
      %s135 = sphi 0, %s133
      %s136 = sphi 0, %s135
      %s150 = sphi 0, %s136
      %s154 = sphi 0, %s154
      %s156 = sphi 0, %s154
      %s157 = sphi 0, %s156
      %s171 = sphi 0, %s157
      %s177 = sphi 0, %s179
      %s180 = sphi 0, %s177
      %s181 = sphi 0, %s180
      %s197 = sphi 0, %s181
    $region4: #{tpu_custom_call.1} parent=1 // loop_header_branch
      %18 = sbr.rel (%p16) target = $region8
    $region5: #{tpu_custom_call.1} parent=1 // loop_body
      %s20 = ssub.s32 %s15, 1
      %s21 = ssub.s32 %s15, 2
      %s22 = sadd.s32 %s15, 1
      %s23 = ssub.s32 %s15, %s22
      %p24 = scmp.eq.s32.totalorder %s23, 0
      %s26 = sadd.s32 %s25, 1
      %s27 = scalar_select %p24, %s25, %s26
      %p30 = pneg %p24
      %p31 = scmp.eq.s32.totalorder %s15, 1
      %p32 = por %p30, %p31
      %p33 = scmp.ne.s32.totalorder %s25, %s28
      %p34 = scmp.eq.s32.totalorder %s15, 0
      %p35 = por %p33, %p34
      %p36 = scmp.ne.s32.totalorder %s25, %s28
      %p37 = scmp.eq.s32.totalorder %s20, 1
      %p38 = por %p36, %p37
      %p39 = scmp.ne.s32.totalorder %s28, %s29
      %p40 = scmp.eq.s32.totalorder %s20, 0
      %p41 = por %p39, %p40
      %p42 = scmp.ne.s32.totalorder %s28, %s29
      %p43 = scmp.eq.s32.totalorder %s21, 1
      %p44 = por %p42, %p43
      %p46 = scmp.ne.s32.totalorder %s29, %s45
      %p47 = scmp.eq.s32.totalorder %s21, 0
      %p48 = por %p46, %p47
      %s50 = sadd.s32 %s49, 1
      %p53 = scmp.eq.s32.totalorder %s15, 1
      %p54 = scmp.ne.s32.totalorder %s49, %s51
      %p55 = scmp.eq.s32.totalorder %s15, 0
      %p56 = por %p54, %p55
      %p57 = scmp.ne.s32.totalorder %s49, %s51
      %p58 = scmp.eq.s32.totalorder %s20, 1
      %p59 = por %p57, %p58
      %p60 = scmp.ne.s32.totalorder %s51, %s52
      %p61 = scmp.eq.s32.totalorder %s20, 0
      %p62 = por %p60, %p61
      %p63 = scmp.ne.s32.totalorder %s51, %s52
      %p64 = scmp.eq.s32.totalorder %s21, 1
      %p65 = por %p63, %p64
      %p67 = scmp.ne.s32.totalorder %s52, %s66
      %p68 = scmp.eq.s32.totalorder %s21, 0
      %p69 = por %p67, %p68
      %s71 = sadd.s32 %s70, 1
      %p74 = scmp.eq.s32.totalorder %s15, 1
      %p75 = scmp.ne.s32.totalorder %s70, %s72
      %p76 = scmp.eq.s32.totalorder %s15, 0
      %p77 = por %p75, %p76
      %p78 = scmp.ne.s32.totalorder %s70, %s72
      %p79 = scmp.eq.s32.totalorder %s20, 1
      %p80 = por %p78, %p79
      %p81 = scmp.ne.s32.totalorder %s72, %s73
      %p82 = scmp.eq.s32.totalorder %s20, 0
      %p83 = por %p81, %p82
      %p84 = scmp.ne.s32.totalorder %s72, %s73
      %p85 = scmp.eq.s32.totalorder %s21, 1
      %p86 = por %p84, %p85
      %p88 = scmp.ne.s32.totalorder %s73, %s87
      %p89 = scmp.eq.s32.totalorder %s21, 0
      %p90 = por %p88, %p89
      %s92 = sadd.s32 %s91, 1
      %p95 = scmp.eq.s32.totalorder %s15, 1
      %p96 = scmp.ne.s32.totalorder %s91, %s93
      %p97 = scmp.eq.s32.totalorder %s15, 0
      %p98 = por %p96, %p97
      %p99 = scmp.ne.s32.totalorder %s91, %s93
      %p100 = scmp.eq.s32.totalorder %s20, 1
      %p101 = por %p99, %p100
      %p102 = scmp.ne.s32.totalorder %s93, %s94
      %p103 = scmp.eq.s32.totalorder %s20, 0
      %p104 = por %p102, %p103
      %p105 = scmp.ne.s32.totalorder %s93, %s94
      %p106 = scmp.eq.s32.totalorder %s21, 1
      %p107 = por %p105, %p106
      %p109 = scmp.ne.s32.totalorder %s94, %s108
      %p110 = scmp.eq.s32.totalorder %s21, 0
      %p111 = por %p109, %p110
      %s113 = sadd.s32 %s112, 1
      %p116 = scmp.eq.s32.totalorder %s15, 1
      %p117 = scmp.ne.s32.totalorder %s112, %s114
      %p118 = scmp.eq.s32.totalorder %s15, 0
      %p119 = por %p117, %p118
      %p120 = scmp.ne.s32.totalorder %s112, %s114
      %p121 = scmp.eq.s32.totalorder %s20, 1
      %p122 = por %p120, %p121
      %p123 = scmp.ne.s32.totalorder %s114, %s115
      %p124 = scmp.eq.s32.totalorder %s20, 0
      %p125 = por %p123, %p124
      %p126 = scmp.ne.s32.totalorder %s114, %s115
      %p127 = scmp.eq.s32.totalorder %s21, 1
      %p128 = por %p126, %p127
      %p130 = scmp.ne.s32.totalorder %s115, %s129
      %p131 = scmp.eq.s32.totalorder %s21, 0
      %p132 = por %p130, %p131
      %s134 = sadd.s32 %s133, 1
      %p137 = scmp.eq.s32.totalorder %s15, 1
      %p138 = scmp.ne.s32.totalorder %s133, %s135
      %p139 = scmp.eq.s32.totalorder %s15, 0
      %p140 = por %p138, %p139
      %p141 = scmp.ne.s32.totalorder %s133, %s135
      %p142 = scmp.eq.s32.totalorder %s20, 1
      %p143 = por %p141, %p142
      %p144 = scmp.ne.s32.totalorder %s135, %s136
      %p145 = scmp.eq.s32.totalorder %s20, 0
      %p146 = por %p144, %p145
      %p147 = scmp.ne.s32.totalorder %s135, %s136
      %p148 = scmp.eq.s32.totalorder %s21, 1
      %p149 = por %p147, %p148
      %p151 = scmp.ne.s32.totalorder %s136, %s150
      %p152 = scmp.eq.s32.totalorder %s21, 0
      %p153 = por %p151, %p152
      %s155 = sadd.s32 %s154, 1
      %p158 = scmp.eq.s32.totalorder %s15, 1
      %p159 = scmp.ne.s32.totalorder %s154, %s156
      %p160 = scmp.eq.s32.totalorder %s15, 0
      %p161 = por %p159, %p160
      %p162 = scmp.ne.s32.totalorder %s154, %s156
      %p163 = scmp.eq.s32.totalorder %s20, 1
      %p164 = por %p162, %p163
      %p165 = scmp.ne.s32.totalorder %s156, %s157
      %p166 = scmp.eq.s32.totalorder %s20, 0
      %p167 = por %p165, %p166
      %p168 = scmp.ne.s32.totalorder %s156, %s157
      %p169 = scmp.eq.s32.totalorder %s21, 1
      %p170 = por %p168, %p169
      %p172 = scmp.ne.s32.totalorder %s157, %s171
      %p173 = scmp.eq.s32.totalorder %s21, 0
      %p174 = por %p172, %p173
      %s175 = ssub.s32 %s15, %s22
      %p176 = scmp.eq.s32.totalorder %s175, 0
      %s178 = sadd.s32 %s177, 1
      %s179 = scalar_select %p176, %s177, %s178
      %p182 = pneg %p176
      %p183 = scmp.eq.s32.totalorder %s15, 1
      %p184 = por %p182, %p183
      %p185 = scmp.ne.s32.totalorder %s177, %s180
      %p186 = scmp.eq.s32.totalorder %s15, 0
      %p187 = por %p185, %p186
      %p188 = scmp.ne.s32.totalorder %s177, %s180
      %p189 = scmp.eq.s32.totalorder %s20, 1
      %p190 = por %p188, %p189
      %p191 = scmp.ne.s32.totalorder %s180, %s181
      %p192 = scmp.eq.s32.totalorder %s20, 0
      %p193 = por %p191, %p192
      %p194 = scmp.ne.s32.totalorder %s180, %s181
      %p195 = scmp.eq.s32.totalorder %s21, 1
      %p196 = por %p194, %p195
      %p198 = scmp.ne.s32.totalorder %s181, %s197
      %p199 = scmp.eq.s32.totalorder %s21, 0
      %p200 = por %p198, %p199
      %p201 = scmp.le.s32.totalorder 1, %s15
      %p202 = scmp.lt.s32.totalorder %s15, 3
      %p203 = pnand %p201, %p202
      %p204 = pneg %p203
      // Predicated region
      $region9: #{tpu_custom_call.1} parent=5 // pred_check
        _
      $region10: #{tpu_custom_call.1} parent=5 // pred_check_branch
        %206 = sbr.rel (%p203) target = $region12
      $region11: #{tpu_custom_call.1} parent=5 // pred_region
        %s207 = ssub.s32 %s15, 1
        // Predicated region
        $region13: #{tpu_custom_call.1} parent=11 // pred_check
          %p208 = pneg %p62
        $region14: #{tpu_custom_call.1} parent=11 // pred_check_branch
          %210 = sbr.rel (%p208) target = $region16
        $region15: #{tpu_custom_call.1} parent=11 // pred_region
          %212 = vsyncadd [#allocation3], 0
          %s213 = sshll.u32 %s1, 4
          %s214 = int_to_ptr.hbm [resolvable:$true] %s213
          %s215 = sshll.u32 [#allocation2], 4
          %s216 = int_to_ptr.vmem [resolvable:$true] %s215
          %221 = dma.hbm_to_vmem [thread:$0]  %s214, 256, %s216, [#allocation3], 64, 64, 4
        $region16: #{tpu_custom_call.1} parent=11 // pred_fallthru
          _
        // Predicated region
        $region17: #{tpu_custom_call.1} parent=11 // pred_check
          %p222 = pneg %p83
        $region18: #{tpu_custom_call.1} parent=11 // pred_check_branch
          %224 = sbr.rel (%p222) target = $region20
        $region19: #{tpu_custom_call.1} parent=11 // pred_region
          _
        $region20: #{tpu_custom_call.1} parent=11 // pred_fallthru
          _
        // Predicated region
        $region21: #{tpu_custom_call.1} parent=11 // pred_check
          %p225 = pneg %p104
        $region22: #{tpu_custom_call.1} parent=11 // pred_check_branch
          %227 = sbr.rel (%p225) target = $region24
        $region23: #{tpu_custom_call.1} parent=11 // pred_region
          %229 = vsyncadd [#allocation5], 0
          %s230 = sshll.u32 %s3, 4
          %s231 = int_to_ptr.hbm [resolvable:$true] %s230
          %s232 = sshll.u32 [#allocation4], 4
          %s233 = int_to_ptr.vmem [resolvable:$true] %s232
          %238 = dma.hbm_to_vmem [thread:$0]  %s231, 512, %s233, [#allocation5], 64, 64, 4
        $region24: #{tpu_custom_call.1} parent=11 // pred_fallthru
          _
        // Predicated region
        $region25: #{tpu_custom_call.1} parent=11 // pred_check
          %p239 = pneg %p125
        $region26: #{tpu_custom_call.1} parent=11 // pred_check_branch
          %241 = sbr.rel (%p239) target = $region28
        $region27: #{tpu_custom_call.1} parent=11 // pred_region
          _
        $region28: #{tpu_custom_call.1} parent=11 // pred_fallthru
          _
        // Predicated region
        $region29: #{tpu_custom_call.1} parent=11 // pred_check
          %p242 = pneg %p146
        $region30: #{tpu_custom_call.1} parent=11 // pred_check_branch
          %244 = sbr.rel (%p242) target = $region32
        $region31: #{tpu_custom_call.1} parent=11 // pred_region
          _
        $region32: #{tpu_custom_call.1} parent=11 // pred_fallthru
          _
        // Predicated region
        $region33: #{tpu_custom_call.1} parent=11 // pred_check
          %p245 = pneg %p167
        $region34: #{tpu_custom_call.1} parent=11 // pred_check_branch
          %247 = sbr.rel (%p245) target = $region36
        $region35: #{tpu_custom_call.1} parent=11 // pred_region
          _
        $region36: #{tpu_custom_call.1} parent=11 // pred_fallthru
          _
      $region12: #{tpu_custom_call.1} parent=5 // pred_fallthru
        _
      %p248 = scmp.lt.s32.totalorder %s15, 2
      // Predicated region
      $region37: #{tpu_custom_call.1} parent=5 // pred_check
        %p249 = pneg %p248
      $region38: #{tpu_custom_call.1} parent=5 // pred_check_branch
        %251 = sbr.rel (%p249) target = $region40
      $region39: #{tpu_custom_call.1} parent=5 // pred_region
        // Predicated region
        $region41: #{tpu_custom_call.1} parent=39 // pred_check
          %p252 = pneg %p35
        $region42: #{tpu_custom_call.1} parent=39 // pred_check_branch
          %254 = sbr.rel (%p252) target = $region44
        $region43: #{tpu_custom_call.1} parent=39 // pred_region
          %s255 = smul.u32 2, %s15
          %p256 = scmp.lt.s32.totalorder %s255, 3
          %s257 = scalar_select %p256, %s255, 3
          %s258 = smul.addr %s257, 8
          %s259 = scalar_lea.vmem %s0, %s258
          %s260 = smul.u32 2, %s15
        $region44: #{tpu_custom_call.1} parent=39 // pred_fallthru
          _
      $region40: #{tpu_custom_call.1} parent=5 // pred_fallthru
        _
      %p261 = scmp.le.s32.totalorder 1, %s15
      %p262 = scmp.lt.s32.totalorder %s15, 3
      %p263 = pnand %p261, %p262
      %p264 = pneg %p263
      // Predicated region
      $region45: #{tpu_custom_call.1} parent=5 // pred_check
        _
      $region46: #{tpu_custom_call.1} parent=5 // pred_check_branch
        %266 = sbr.rel (%p263) target = $region48
      $region47: #{tpu_custom_call.1} parent=5 // pred_region
        %s267 = ssub.s32 %s15, 1
        // Predicated region
        $region49: #{tpu_custom_call.1} parent=47 // pred_check
          %p268 = pneg %p62
        $region50: #{tpu_custom_call.1} parent=47 // pred_check_branch
          %270 = sbr.rel (%p268) target = $region52
        $region51: #{tpu_custom_call.1} parent=47 // pred_region
          %272 = dma.done [#allocation3], 256
        $region52: #{tpu_custom_call.1} parent=47 // pred_fallthru
          _
        // Predicated region
        $region53: #{tpu_custom_call.1} parent=47 // pred_check
          %p273 = pneg %p104
        $region54: #{tpu_custom_call.1} parent=47 // pred_check_branch
          %275 = sbr.rel (%p273) target = $region56
        $region55: #{tpu_custom_call.1} parent=47 // pred_region
          %277 = dma.done [#allocation5], 512
        $region56: #{tpu_custom_call.1} parent=47 // pred_fallthru
          _
        %s278 = smul.u32 2, %s20
        %p279 = scmp.lt.s32.totalorder %s278, 3
        %s280 = scalar_select %p279, %s278, 3
        %s281 = smul.addr %s280, 8
        %s282 = scalar_lea.vmem %s0, %s281
        %p283 = pneg %p41
        %p284 = pneg %p38
        %p285 = pneg %p62
        %p286 = pneg %p59
        %p287 = pneg %p83
        %p288 = pneg %p80
        %p289 = pneg %p104
        %p290 = pneg %p101
        %p291 = pneg %p125
        %p292 = pneg %p122
        %p293 = pneg %p146
        %p294 = pneg %p143
        %p295 = pneg %p167
        %p296 = pneg %p164
        %p297 = pneg %p193
        %p298 = pneg %p190
        %s299 = smul.u32 2, %s20
        %p300 = scmp.lt.s32.totalorder %s299, 3
        %s301 = scalar_select %p300, %s299, 3
        %s302 = smul.addr %s301, 8
        %s303 = scalar_lea.vmem %s7, %s302
        %s304 = smul.u32 2, %s20
        %p305 = scmp.lt.s32.totalorder %s304, 3
        %s306 = scalar_select %p305, %s304, 3
        %s307 = smul.addr %s306, 8
        %s308 = scalar_lea.vmem %s0, %s307
        %s309 = smul.u32 2, %s20
        %s310 = smul.u32 2, %s20
        %p311 = scmp.lt.s32.totalorder %s310, 3
        %s312 = scalar_select %p311, %s310, 3
        %s313 = smul.addr %s312, 8
        %s314 = scalar_lea.vmem %s7, %s313
        %s315 = smul.u32 2, %s20
        %v317 = vld [vmem:[%s308] sm:$0xff]
        %v318 = vld [vmem:[%s308 + $0x8] sm:$0xff]
        %v319 = vpack.c.bf16 %v318, %v317
        %v320 = vld [vmem:[#allocation2] sm:$0xf]
        %v321 = vld [vmem:[#allocation2 + $0x4] sm:$0xf]
        %v322 = vld [vmem:[#allocation2 + $0x8] sm:$0xf]
        %v323 = vld [vmem:[#allocation2 + $0xc] sm:$0xf]
        %v324 = vld [vmem:[%s2] sm:$0x1]
        %v326 = vperm.slane %v324, 0
        %v332 = vunpack.c.l.b16 %v320
        %v333 = vunpack.c.l.b16 %v321
        %v334 = vunpack.c.l.b16 %v322
        %v335 = vunpack.c.l.b16 %v323
        %v336 = vpack.c.b16 %v333, %v332
        %v337 = vpack.c.b16 %v335, %v334
        %vm340 = vcmask 261120
        %v342 = vsel %vm340, %v319, 0
        %344 = vmatpush.bf16.msra.mxu0 0
        %345 = vmatpush.bf16.msra.mxu0 0
        %346 = vmatpush.bf16.msra.mxu0 0
        %347 = vmatpush.bf16.msra.mxu0 0
        %348 = vmatpush.bf16.msra.mxu0 0
        %349 = vmatpush.bf16.msra.mxu0 0
        %350 = vmatpush.bf16.msra.mxu0 %v337
        %351 = vmatpush.bf16.msra.mxu0 %v336
        %352 = vmatmul.bf16.gmra.mxu0 %v342
        %v353 = vpop.f32.mrf.mxu0
        %v354 = vadd.f32 %v326, %v353
        %v355 = vpop.f32.mrf.mxu0
        %v356 = vadd.f32 %v326, %v355
        %357 = vdwg.mxu0
        %v358 = vmax.f32 %v354, 0.0
        %v359 = vmax.f32 %v356, 0.0
        %v360 = vpack.c.bf16 %v359, %v358
        %v361 = vld [vmem:[#allocation4] sm:$0xf]
        %v362 = vld [vmem:[#allocation4 + $0x4] sm:$0xf]
        %v363 = vld [vmem:[#allocation4 + $0x8] sm:$0xf]
        %v364 = vld [vmem:[#allocation4 + $0xc] sm:$0xf]
        %v365 = vld [vmem:[#allocation4 + $0x10] sm:$0xf]
        %v366 = vld [vmem:[#allocation4 + $0x14] sm:$0xf]
        %v367 = vld [vmem:[#allocation4 + $0x18] sm:$0xf]
        %v368 = vld [vmem:[#allocation4 + $0x1c] sm:$0xf]
        %v369 = vld [vmem:[%s4] sm:$0x1]
        %v371 = vperm.slane %v369, 0
        %v381 = vunpack.c.l.b16 %v361
        %v382 = vunpack.c.l.b16 %v362
        %v383 = vunpack.c.l.b16 %v363
        %v384 = vunpack.c.l.b16 %v364
        %v385 = vunpack.c.l.b16 %v365
        %v386 = vunpack.c.l.b16 %v366
        %v387 = vunpack.c.l.b16 %v367
        %v388 = vunpack.c.l.b16 %v368
        %v389 = vpack.c.b16 %v382, %v381
        %v390 = vpack.c.b16 %v384, %v383
        %v391 = vpack.c.b16 %v386, %v385
        %v392 = vpack.c.b16 %v388, %v387
        %vm397 = vcmask 523264
        %v399 = vsel %vm397, %v360, 0
        %401 = vmatpush.bf16.msra.mxu0 0
        %402 = vmatpush.bf16.msra.mxu0 0
        %403 = vmatpush.bf16.msra.mxu0 0
        %404 = vmatpush.bf16.msra.mxu0 0
        %405 = vmatpush.bf16.msra.mxu0 %v392
        %406 = vmatpush.bf16.msra.mxu0 %v391
        %407 = vmatpush.bf16.msra.mxu0 %v390
        %408 = vmatpush.bf16.msra.mxu0 %v389
        %409 = vmatmul.bf16.gmra.mxu0 %v399
        %v410 = vpop.f32.mrf.mxu0
        %v411 = vadd.f32 %v371, %v410
        %v412 = vpop.f32.mrf.mxu0
        %v413 = vadd.f32 %v371, %v412
        %414 = vdwg.mxu0
        %v415 = vmax.f32 %v411, 0.0
        %v416 = vmax.f32 %v413, 0.0
        %v417 = vpack.c.bf16 %v416, %v415
        %v418 = vld [vmem:[%s5] sm:$0xf]
        %v419 = vld [vmem:[%s5 + $0x4] sm:$0xf]
        %v420 = vld [vmem:[%s5 + $0x8] sm:$0xf]
        %v421 = vld [vmem:[%s5 + $0xc] sm:$0xf]
        %v422 = vld [vmem:[%s5 + $0x10] sm:$0xf]
        %v423 = vld [vmem:[%s5 + $0x14] sm:$0xf]
        %v424 = vld [vmem:[%s5 + $0x18] sm:$0xf]
        %v425 = vld [vmem:[%s5 + $0x1c] sm:$0xf]
        %v426 = vld [vmem:[%s6] sm:$0x1]
        %v428 = vperm.slane %v426, 0
        %v438 = vunpack.c.l.b16 %v418
        %v439 = vunpack.c.l.b16 %v419
        %v440 = vunpack.c.l.b16 %v420
        %v441 = vunpack.c.l.b16 %v421
        %v442 = vunpack.c.l.b16 %v422
        %v443 = vunpack.c.l.b16 %v423
        %v444 = vunpack.c.l.b16 %v424
        %v445 = vunpack.c.l.b16 %v425
        %v446 = vpack.c.b16 %v439, %v438
        %v447 = vpack.c.b16 %v441, %v440
        %v448 = vpack.c.b16 %v443, %v442
        %v449 = vpack.c.b16 %v445, %v444
        %v455 = vsel %vm397, %v417, 0
        %457 = vmatpush.bf16.msra.mxu0 0
        %458 = vmatpush.bf16.msra.mxu0 0
        %459 = vmatpush.bf16.msra.mxu0 0
        %460 = vmatpush.bf16.msra.mxu0 0
        %461 = vmatpush.bf16.msra.mxu0 %v449
        %462 = vmatpush.bf16.msra.mxu0 %v448
        %463 = vmatpush.bf16.msra.mxu0 %v447
        %464 = vmatpush.bf16.msra.mxu0 %v446
        %465 = vmatmul.bf16.gmra.mxu0 %v455
        %v466 = vpop.f32.mrf.mxu0
        %v467 = vadd.f32 %v428, %v466
        %v468 = vpop.f32.mrf.mxu0
        %v469 = vadd.f32 %v428, %v468
        %470 = vdwg.mxu0
        %vm471 = vcmask 130048
        %472 = vst.msk [vmem:[%s314] sm:$0xff] %vm471, %v467
        %473 = vst.msk [vmem:[%s314 + $0x8] sm:$0xff] %vm471, %v469
        %s474 = smul.u32 2, %s20
        %p475 = scmp.lt.s32.totalorder %s474, 3
        %s476 = scalar_select %p475, %s474, 3
        %s477 = smul.addr %s476, 8
        %s478 = scalar_lea.vmem %s7, %s477
        // Predicated region
        $region57: #{tpu_custom_call.1} parent=47 // pred_check
          %p479 = pneg %p190
        $region58: #{tpu_custom_call.1} parent=47 // pred_check_branch
          %481 = sbr.rel (%p479) target = $region60
        $region59: #{tpu_custom_call.1} parent=47 // pred_region
          %s482 = smul.u32 2, %s20
        $region60: #{tpu_custom_call.1} parent=47 // pred_fallthru
          _
      $region48: #{tpu_custom_call.1} parent=5 // pred_fallthru
        _
      %p483 = scmp.le.s32.totalorder 2, %s15
      // Predicated region
      $region61: #{tpu_custom_call.1} parent=5 // pred_check
        %p484 = pneg %p483
      $region62: #{tpu_custom_call.1} parent=5 // pred_check_branch
        %486 = sbr.rel (%p484) target = $region64
      $region63: #{tpu_custom_call.1} parent=5 // pred_region
        %s487 = ssub.s32 %s15, 2
        // Predicated region
        $region65: #{tpu_custom_call.1} parent=63 // pred_check
          %p488 = pneg %p196
        $region66: #{tpu_custom_call.1} parent=63 // pred_check_branch
          %490 = sbr.rel (%p488) target = $region68
        $region67: #{tpu_custom_call.1} parent=63 // pred_region
          %s491 = smul.u32 2, %s21
          %p492 = scmp.lt.s32.totalorder %s491, 3
          %s493 = scalar_select %p492, %s491, 3
          %s494 = smul.addr %s493, 8
          %s495 = scalar_lea.vmem %s7, %s494
        $region68: #{tpu_custom_call.1} parent=63 // pred_fallthru
          _
      $region64: #{tpu_custom_call.1} parent=5 // pred_fallthru
        _
    $region6: #{tpu_custom_call.1} parent=1 // loop_footer
      %s19 = sadd.s32 1, %s15
    $region7: #{tpu_custom_call.1} parent=1 // loop_footer_branch
      %14 = sbr.rel target = $region3
    $region8: #{tpu_custom_call.1} parent=1 // loop_exit
      _
    %496 = vsyncpa [#allocation3], 1
    %s497 = scalar_lea.sflag [#allocation3], 1
    %498 = vsyncpa %s497, 1
    %499 = vsyncpa [#allocation5], 1

// kernel: tpu_custom_call.1
$region0: #{tpu_custom_call.1}
  #allocation0 [shape = 'u32[]', space=smem, size = 0x4, offset = 0x4, fixed_abs, tag = 'smem constant byte address 0x4 - core index']
  #allocation1 [shape = 'u32[72,128]{1,0:T(1,128)}', space=vmem, size = 0x9000, scoped, tag = 'internal scratch']
  %s0 = inlined_call_operand.vmem [shape: f32[30,32], index: 0, kind: input, shape index: {}]
  %s1 = inlined_call_operand.hbm [shape: bf16[32,64], index: 1, kind: input, shape index: {}]
  %s2 = inlined_call_operand.vmem [shape: f32[1,64], index: 2, kind: input, shape index: {}]
  %s3 = inlined_call_operand.hbm [shape: bf16[64,64], index: 3, kind: input, shape index: {}]
  %s4 = inlined_call_operand.vmem [shape: f32[1,64], index: 4, kind: input, shape index: {}]
  %s5 = inlined_call_operand.vmem [shape: bf16[64,16], index: 5, kind: input, shape index: {}]
  %s6 = inlined_call_operand.vmem [shape: f32[1,16], index: 6, kind: input, shape index: {}]
  %s7 = inlined_call_operand.vmem [shape: f32[30,16], index: 7, kind: output, shape index: {}]
  %s8 = sld [smem:[#allocation0]]
  $region69: #{tpu_custom_call.1} parent=0
    _
  %s10 = ssub.s32 1, %s8
  %s11 = scalar_select 0, %s10, %s8
  $region1: #{tpu_custom_call.1} parent=0
    #allocation2 [shape = 'u8[8192]{0}', space=vmem, size = 0x2000, scoped, tag = 'input window, operand 1, single buffered']
    #allocation3 [shape = 's32[2]{0}', space=sflag, size = 0x8, scoped, tag = 'scoped memory for tpu_custom_call.1']
    #allocation4 [shape = 'u8[16384]{0}', space=vmem, size = 0x4000, scoped, tag = 'input window, operand 3, single buffered']
    #allocation5 [shape = 's32[1]{0}', space=sflag, size = 0x4, scoped, tag = 'scoped memory for tpu_custom_call.1']
    %12 = vsyncpa [#allocation3], 0
    %13 = vsyncpa [#allocation5], 0
    loop: start=0, step=1, limit=4
    $region2: #{tpu_custom_call.1} parent=1 // loop_pre_header
      _
    $region3: #{tpu_custom_call.1} parent=1 // loop_header
      %s15 = sphi 0, %s19
      %p16 = scmp.ge.s32.totalorder %s15, 4
      %s25 = sphi 0, %s27
      %s28 = sphi 0, %s25
      %s29 = sphi 0, %s28
      %s45 = sphi 0, %s29
      %s49 = sphi 0, %s49
      %s51 = sphi 0, %s49
      %s52 = sphi 0, %s51
      %s66 = sphi 0, %s52
      %s70 = sphi 0, %s70
      %s72 = sphi 0, %s70
      %s73 = sphi 0, %s72
      %s87 = sphi 0, %s73
      %s91 = sphi 0, %s91
      %s93 = sphi 0, %s91
      %s94 = sphi 0, %s93
      %s108 = sphi 0, %s94
      %s112 = sphi 0, %s112
      %s114 = sphi 0, %s112
      %s115 = sphi 0, %s114
      %s129 = sphi 0, %s115
      %s133 = sphi 0, %s133
      %s135 = sphi 0, %s133
      %s136 = sphi 0, %s135
      %s150 = sphi 0, %s136
      %s154 = sphi 0, %s154
      %s156 = sphi 0, %s154
      %s157 = sphi 0, %s156
      %s171 = sphi 0, %s157
      %s177 = sphi 0, %s179
      %s180 = sphi 0, %s177
      %s181 = sphi 0, %s180
      %s197 = sphi 0, %s181
    $region4: #{tpu_custom_call.1} parent=1 // loop_header_branch
      %18 = sbr.rel (%p16) target = $region8
    $region5: #{tpu_custom_call.1} parent=1 // loop_body
      %s20 = ssub.s32 %s15, 1
      %s21 = ssub.s32 %s15, 2
      %s22 = sadd.s32 %s15, 1
      %s23 = ssub.s32 %s15, %s22
      %p24 = scmp.eq.s32.totalorder %s23, 0
      %s26 = sadd.s32 %s25, 1
      %s27 = scalar_select %p24, %s25, %s26
      %p30 = pneg %p24
      %p31 = scmp.eq.s32.totalorder %s15, 1
      %p32 = por %p30, %p31
      %p33 = scmp.ne.s32.totalorder %s25, %s28
      %p34 = scmp.eq.s32.totalorder %s15, 0
      %p35 = por %p33, %p34
      %p36 = scmp.ne.s32.totalorder %s25, %s28
      %p37 = scmp.eq.s32.totalorder %s20, 1
      %p38 = por %p36, %p37
      %p39 = scmp.ne.s32.totalorder %s28, %s29
      %p40 = scmp.eq.s32.totalorder %s20, 0
      %p41 = por %p39, %p40
      %p42 = scmp.ne.s32.totalorder %s28, %s29
      %p43 = scmp.eq.s32.totalorder %s21, 1
      %p44 = por %p42, %p43
      %p46 = scmp.ne.s32.totalorder %s29, %s45
      %p47 = scmp.eq.s32.totalorder %s21, 0
      %p48 = por %p46, %p47
      %s50 = sadd.s32 %s49, 1
      %p53 = scmp.eq.s32.totalorder %s15, 1
      %p54 = scmp.ne.s32.totalorder %s49, %s51
      %p55 = scmp.eq.s32.totalorder %s15, 0
      %p56 = por %p54, %p55
      %p57 = scmp.ne.s32.totalorder %s49, %s51
      %p58 = scmp.eq.s32.totalorder %s20, 1
      %p59 = por %p57, %p58
      %p60 = scmp.ne.s32.totalorder %s51, %s52
      %p61 = scmp.eq.s32.totalorder %s20, 0
      %p62 = por %p60, %p61
      %p63 = scmp.ne.s32.totalorder %s51, %s52
      %p64 = scmp.eq.s32.totalorder %s21, 1
      %p65 = por %p63, %p64
      %p67 = scmp.ne.s32.totalorder %s52, %s66
      %p68 = scmp.eq.s32.totalorder %s21, 0
      %p69 = por %p67, %p68
      %s71 = sadd.s32 %s70, 1
      %p74 = scmp.eq.s32.totalorder %s15, 1
      %p75 = scmp.ne.s32.totalorder %s70, %s72
      %p76 = scmp.eq.s32.totalorder %s15, 0
      %p77 = por %p75, %p76
      %p78 = scmp.ne.s32.totalorder %s70, %s72
      %p79 = scmp.eq.s32.totalorder %s20, 1
      %p80 = por %p78, %p79
      %p81 = scmp.ne.s32.totalorder %s72, %s73
      %p82 = scmp.eq.s32.totalorder %s20, 0
      %p83 = por %p81, %p82
      %p84 = scmp.ne.s32.totalorder %s72, %s73
      %p85 = scmp.eq.s32.totalorder %s21, 1
      %p86 = por %p84, %p85
      %p88 = scmp.ne.s32.totalorder %s73, %s87
      %p89 = scmp.eq.s32.totalorder %s21, 0
      %p90 = por %p88, %p89
      %s92 = sadd.s32 %s91, 1
      %p95 = scmp.eq.s32.totalorder %s15, 1
      %p96 = scmp.ne.s32.totalorder %s91, %s93
      %p97 = scmp.eq.s32.totalorder %s15, 0
      %p98 = por %p96, %p97
      %p99 = scmp.ne.s32.totalorder %s91, %s93
      %p100 = scmp.eq.s32.totalorder %s20, 1
      %p101 = por %p99, %p100
      %p102 = scmp.ne.s32.totalorder %s93, %s94
      %p103 = scmp.eq.s32.totalorder %s20, 0
      %p104 = por %p102, %p103
      %p105 = scmp.ne.s32.totalorder %s93, %s94
      %p106 = scmp.eq.s32.totalorder %s21, 1
      %p107 = por %p105, %p106
      %p109 = scmp.ne.s32.totalorder %s94, %s108
      %p110 = scmp.eq.s32.totalorder %s21, 0
      %p111 = por %p109, %p110
      %s113 = sadd.s32 %s112, 1
      %p116 = scmp.eq.s32.totalorder %s15, 1
      %p117 = scmp.ne.s32.totalorder %s112, %s114
      %p118 = scmp.eq.s32.totalorder %s15, 0
      %p119 = por %p117, %p118
      %p120 = scmp.ne.s32.totalorder %s112, %s114
      %p121 = scmp.eq.s32.totalorder %s20, 1
      %p122 = por %p120, %p121
      %p123 = scmp.ne.s32.totalorder %s114, %s115
      %p124 = scmp.eq.s32.totalorder %s20, 0
      %p125 = por %p123, %p124
      %p126 = scmp.ne.s32.totalorder %s114, %s115
      %p127 = scmp.eq.s32.totalorder %s21, 1
      %p128 = por %p126, %p127
      %p130 = scmp.ne.s32.totalorder %s115, %s129
      %p131 = scmp.eq.s32.totalorder %s21, 0
      %p132 = por %p130, %p131
      %s134 = sadd.s32 %s133, 1
      %p137 = scmp.eq.s32.totalorder %s15, 1
      %p138 = scmp.ne.s32.totalorder %s133, %s135
      %p139 = scmp.eq.s32.totalorder %s15, 0
      %p140 = por %p138, %p139
      %p141 = scmp.ne.s32.totalorder %s133, %s135
      %p142 = scmp.eq.s32.totalorder %s20, 1
      %p143 = por %p141, %p142
      %p144 = scmp.ne.s32.totalorder %s135, %s136
      %p145 = scmp.eq.s32.totalorder %s20, 0
      %p146 = por %p144, %p145
      %p147 = scmp.ne.s32.totalorder %s135, %s136
      %p148 = scmp.eq.s32.totalorder %s21, 1
      %p149 = por %p147, %p148
      %p151 = scmp.ne.s32.totalorder %s136, %s150
      %p152 = scmp.eq.s32.totalorder %s21, 0
      %p153 = por %p151, %p152
      %s155 = sadd.s32 %s154, 1
      %p158 = scmp.eq.s32.totalorder %s15, 1
      %p159 = scmp.ne.s32.totalorder %s154, %s156
      %p160 = scmp.eq.s32.totalorder %s15, 0
      %p161 = por %p159, %p160
      %p162 = scmp.ne.s32.totalorder %s154, %s156
      %p163 = scmp.eq.s32.totalorder %s20, 1
      %p164 = por %p162, %p163
      %p165 = scmp.ne.s32.totalorder %s156, %s157
      %p166 = scmp.eq.s32.totalorder %s20, 0
      %p167 = por %p165, %p166
      %p168 = scmp.ne.s32.totalorder %s156, %s157
      %p169 = scmp.eq.s32.totalorder %s21, 1
      %p170 = por %p168, %p169
      %p172 = scmp.ne.s32.totalorder %s157, %s171
      %p173 = scmp.eq.s32.totalorder %s21, 0
      %p174 = por %p172, %p173
      %s175 = ssub.s32 %s15, %s22
      %p176 = scmp.eq.s32.totalorder %s175, 0
      %s178 = sadd.s32 %s177, 1
      %s179 = scalar_select %p176, %s177, %s178
      %p182 = pneg %p176
      %p183 = scmp.eq.s32.totalorder %s15, 1
      %p184 = por %p182, %p183
      %p185 = scmp.ne.s32.totalorder %s177, %s180
      %p186 = scmp.eq.s32.totalorder %s15, 0
      %p187 = por %p185, %p186
      %p188 = scmp.ne.s32.totalorder %s177, %s180
      %p189 = scmp.eq.s32.totalorder %s20, 1
      %p190 = por %p188, %p189
      %p191 = scmp.ne.s32.totalorder %s180, %s181
      %p192 = scmp.eq.s32.totalorder %s20, 0
      %p193 = por %p191, %p192
      %p194 = scmp.ne.s32.totalorder %s180, %s181
      %p195 = scmp.eq.s32.totalorder %s21, 1
      %p196 = por %p194, %p195
      %p198 = scmp.ne.s32.totalorder %s181, %s197
      %p199 = scmp.eq.s32.totalorder %s21, 0
      %p200 = por %p198, %p199
      %p201 = scmp.le.s32.totalorder 1, %s15
      %p202 = scmp.lt.s32.totalorder %s15, 3
      %p203 = pnand %p201, %p202
      %p204 = pneg %p203
      // Predicated region
      $region9: #{tpu_custom_call.1} parent=5 // pred_check
        _
      $region10: #{tpu_custom_call.1} parent=5 // pred_check_branch
        %206 = sbr.rel (%p203) target = $region12
      $region11: #{tpu_custom_call.1} parent=5 // pred_region
        %s207 = ssub.s32 %s15, 1
        // Predicated region
        $region13: #{tpu_custom_call.1} parent=11 // pred_check
          %p208 = pneg %p62
        $region14: #{tpu_custom_call.1} parent=11 // pred_check_branch
          %210 = sbr.rel (%p208) target = $region16
        $region15: #{tpu_custom_call.1} parent=11 // pred_region
          %212 = vsyncadd [#allocation3], 0
          %s213 = sshll.u32 %s1, 4
          %s214 = int_to_ptr.hbm [resolvable:$true] %s213
          %s215 = sshll.u32 [#allocation2], 4
          %s216 = int_to_ptr.vmem [resolvable:$true] %s215
          %221 = dma.hbm_to_vmem [thread:$0]  %s214, 256, %s216, [#allocation3], 64, 64, 4
        $region16: #{tpu_custom_call.1} parent=11 // pred_fallthru
          _
        // Predicated region
        $region17: #{tpu_custom_call.1} parent=11 // pred_check
          %p222 = pneg %p83
        $region18: #{tpu_custom_call.1} parent=11 // pred_check_branch
          %224 = sbr.rel (%p222) target = $region20
        $region19: #{tpu_custom_call.1} parent=11 // pred_region
          _
        $region20: #{tpu_custom_call.1} parent=11 // pred_fallthru
          _
        // Predicated region
        $region21: #{tpu_custom_call.1} parent=11 // pred_check
          %p225 = pneg %p104
        $region22: #{tpu_custom_call.1} parent=11 // pred_check_branch
          %227 = sbr.rel (%p225) target = $region24
        $region23: #{tpu_custom_call.1} parent=11 // pred_region
          %229 = vsyncadd [#allocation5], 0
          %s230 = sshll.u32 %s3, 4
          %s231 = int_to_ptr.hbm [resolvable:$true] %s230
          %s232 = sshll.u32 [#allocation4], 4
          %s233 = int_to_ptr.vmem [resolvable:$true] %s232
          %238 = dma.hbm_to_vmem [thread:$0]  %s231, 512, %s233, [#allocation5], 64, 64, 4
        $region24: #{tpu_custom_call.1} parent=11 // pred_fallthru
          _
        // Predicated region
        $region25: #{tpu_custom_call.1} parent=11 // pred_check
          %p239 = pneg %p125
        $region26: #{tpu_custom_call.1} parent=11 // pred_check_branch
          %241 = sbr.rel (%p239) target = $region28
        $region27: #{tpu_custom_call.1} parent=11 // pred_region
          _
        $region28: #{tpu_custom_call.1} parent=11 // pred_fallthru
          _
        // Predicated region
        $region29: #{tpu_custom_call.1} parent=11 // pred_check
          %p242 = pneg %p146
        $region30: #{tpu_custom_call.1} parent=11 // pred_check_branch
          %244 = sbr.rel (%p242) target = $region32
        $region31: #{tpu_custom_call.1} parent=11 // pred_region
          _
        $region32: #{tpu_custom_call.1} parent=11 // pred_fallthru
          _
        // Predicated region
        $region33: #{tpu_custom_call.1} parent=11 // pred_check
          %p245 = pneg %p167
        $region34: #{tpu_custom_call.1} parent=11 // pred_check_branch
          %247 = sbr.rel (%p245) target = $region36
        $region35: #{tpu_custom_call.1} parent=11 // pred_region
          _
        $region36: #{tpu_custom_call.1} parent=11 // pred_fallthru
          _
      $region12: #{tpu_custom_call.1} parent=5 // pred_fallthru
        _
      %p248 = scmp.lt.s32.totalorder %s15, 2
      // Predicated region
      $region37: #{tpu_custom_call.1} parent=5 // pred_check
        %p249 = pneg %p248
      $region38: #{tpu_custom_call.1} parent=5 // pred_check_branch
        %251 = sbr.rel (%p249) target = $region40
      $region39: #{tpu_custom_call.1} parent=5 // pred_region
        // Predicated region
        $region41: #{tpu_custom_call.1} parent=39 // pred_check
          %p252 = pneg %p35
        $region42: #{tpu_custom_call.1} parent=39 // pred_check_branch
          %254 = sbr.rel (%p252) target = $region44
        $region43: #{tpu_custom_call.1} parent=39 // pred_region
          %s255 = smul.u32 2, %s15
          %p256 = scmp.lt.s32.totalorder %s255, 3
          %s257 = scalar_select %p256, %s255, 3
          %s258 = smul.addr %s257, 8
          %s259 = scalar_lea.vmem %s0, %s258
          %s260 = smul.u32 2, %s15
        $region44: #{tpu_custom_call.1} parent=39 // pred_fallthru
          _
      $region40: #{tpu_custom_call.1} parent=5 // pred_fallthru
        _
      %p261 = scmp.le.s32.totalorder 1, %s15
      %p262 = scmp.lt.s32.totalorder %s15, 3
      %p263 = pnand %p261, %p262
      %p264 = pneg %p263
      // Predicated region
      $region45: #{tpu_custom_call.1} parent=5 // pred_check
        _
      $region46: #{tpu_custom_call.1} parent=5 // pred_check_branch
        %266 = sbr.rel (%p263) target = $region48
      $region47: #{tpu_custom_call.1} parent=5 // pred_region
        %s267 = ssub.s32 %s15, 1
        // Predicated region
        $region49: #{tpu_custom_call.1} parent=47 // pred_check
          %p268 = pneg %p62
        $region50: #{tpu_custom_call.1} parent=47 // pred_check_branch
          %270 = sbr.rel (%p268) target = $region52
        $region51: #{tpu_custom_call.1} parent=47 // pred_region
          %272 = dma.done [#allocation3], 256
        $region52: #{tpu_custom_call.1} parent=47 // pred_fallthru
          _
        // Predicated region
        $region53: #{tpu_custom_call.1} parent=47 // pred_check
          %p273 = pneg %p104
        $region54: #{tpu_custom_call.1} parent=47 // pred_check_branch
          %275 = sbr.rel (%p273) target = $region56
        $region55: #{tpu_custom_call.1} parent=47 // pred_region
          %277 = dma.done [#allocation5], 512
        $region56: #{tpu_custom_call.1} parent=47 // pred_fallthru
          _
        %s278 = smul.u32 2, %s20
        %p279 = scmp.lt.s32.totalorder %s278, 3
        %s280 = scalar_select %p279, %s278, 3
        %s281 = smul.addr %s280, 8
        %s282 = scalar_lea.vmem %s0, %s281
        %p283 = pneg %p41
        %p284 = pneg %p38
        %p285 = pneg %p62
        %p286 = pneg %p59
        %p287 = pneg %p83
        %p288 = pneg %p80
        %p289 = pneg %p104
        %p290 = pneg %p101
        %p291 = pneg %p125
        %p292 = pneg %p122
        %p293 = pneg %p146
        %p294 = pneg %p143
        %p295 = pneg %p167
        %p296 = pneg %p164
        %p297 = pneg %p193
        %p298 = pneg %p190
        %s299 = smul.u32 2, %s20
        %p300 = scmp.lt.s32.totalorder %s299, 3
        %s301 = scalar_select %p300, %s299, 3
        %s302 = smul.addr %s301, 8
        %s303 = scalar_lea.vmem %s7, %s302
        %s304 = smul.u32 2, %s20
        %p305 = scmp.lt.s32.totalorder %s304, 3
        %s306 = scalar_select %p305, %s304, 3
        %s307 = smul.addr %s306, 8
        %s308 = scalar_lea.vmem %s0, %s307
        %s309 = smul.u32 2, %s20
        %s310 = smul.u32 2, %s20
        %p311 = scmp.lt.s32.totalorder %s310, 3
        %s312 = scalar_select %p311, %s310, 3
        %s313 = smul.addr %s312, 8
        %s314 = scalar_lea.vmem %s7, %s313
        %s315 = smul.u32 2, %s20
        %v317 = vld [vmem:[%s308] sm:$0xff]
        %v318 = vld [vmem:[%s308 + $0x8] sm:$0xff]
        %v319 = vpack.c.bf16 %v318, %v317
        %v320 = vld [vmem:[#allocation2] sm:$0xf]
        %v321 = vld [vmem:[#allocation2 + $0x4] sm:$0xf]
        %v322 = vld [vmem:[#allocation2 + $0x8] sm:$0xf]
        %v323 = vld [vmem:[#allocation2 + $0xc] sm:$0xf]
        %v324 = vld [vmem:[%s2] sm:$0x1]
        %v326 = vperm.slane %v324, 0
        %v332 = vunpack.c.l.b16 %v320
        %v333 = vunpack.c.l.b16 %v321
        %v334 = vunpack.c.l.b16 %v322
        %v335 = vunpack.c.l.b16 %v323
        %v336 = vpack.c.b16 %v333, %v332
        %v337 = vpack.c.b16 %v335, %v334
        %vm340 = vcmask 261120
        %v342 = vsel %vm340, %v319, 0
        %344 = vmatpush.bf16.msra.mxu0 0
        %345 = vmatpush.bf16.msra.mxu0 0
        %346 = vmatpush.bf16.msra.mxu0 0
        %347 = vmatpush.bf16.msra.mxu0 0
        %348 = vmatpush.bf16.msra.mxu0 0
        %349 = vmatpush.bf16.msra.mxu0 0
        %350 = vmatpush.bf16.msra.mxu0 %v337
        %351 = vmatpush.bf16.msra.mxu0 %v336
        %352 = vmatmul.bf16.gmra.mxu0 %v342
        %v353 = vpop.f32.mrf.mxu0
        %v354 = vadd.f32 %v326, %v353
        %v355 = vpop.f32.mrf.mxu0
        %v356 = vadd.f32 %v326, %v355
        %357 = vdwg.mxu0
        %v358 = vmax.f32 %v354, 0.0
        %v359 = vmax.f32 %v356, 0.0
        %v360 = vpack.c.bf16 %v359, %v358
        %v361 = vld [vmem:[#allocation4] sm:$0xf]
        %v362 = vld [vmem:[#allocation4 + $0x4] sm:$0xf]
        %v363 = vld [vmem:[#allocation4 + $0x8] sm:$0xf]
        %v364 = vld [vmem:[#allocation4 + $0xc] sm:$0xf]
        %v365 = vld [vmem:[#allocation4 + $0x10] sm:$0xf]
        %v366 = vld [vmem:[#allocation4 + $0x14] sm:$0xf]
        %v367 = vld [vmem:[#allocation4 + $0x18] sm:$0xf]
        %v368 = vld [vmem:[#allocation4 + $0x1c] sm:$0xf]
        %v369 = vld [vmem:[%s4] sm:$0x1]
        %v371 = vperm.slane %v369, 0
        %v381 = vunpack.c.l.b16 %v361
        %v382 = vunpack.c.l.b16 %v362
        %v383 = vunpack.c.l.b16 %v363
        %v384 = vunpack.c.l.b16 %v364
        %v385 = vunpack.c.l.b16 %v365
        %v386 = vunpack.c.l.b16 %v366
        %v387 = vunpack.c.l.b16 %v367
        %v388 = vunpack.c.l.b16 %v368
        %v389 = vpack.c.b16 %v382, %v381
        %v390 = vpack.c.b16 %v384, %v383
        %v391 = vpack.c.b16 %v386, %v385
        %v392 = vpack.c.b16 %v388, %v387
        %vm397 = vcmask 523264
        %v399 = vsel %vm397, %v360, 0
        %401 = vmatpush.bf16.msra.mxu0 0
        %402 = vmatpush.bf16.msra.mxu0 0
        %403 = vmatpush.bf16.msra.mxu0 0
        %404 = vmatpush.bf16.msra.mxu0 0
        %405 = vmatpush.bf16.msra.mxu0 %v392
        %406 = vmatpush.bf16.msra.mxu0 %v391
        %407 = vmatpush.bf16.msra.mxu0 %v390
        %408 = vmatpush.bf16.msra.mxu0 %v389
        %409 = vmatmul.bf16.gmra.mxu0 %v399
        %v410 = vpop.f32.mrf.mxu0
        %v411 = vadd.f32 %v371, %v410
        %v412 = vpop.f32.mrf.mxu0
        %v413 = vadd.f32 %v371, %v412
        %414 = vdwg.mxu0
        %v415 = vmax.f32 %v411, 0.0
        %v416 = vmax.f32 %v413, 0.0
        %v417 = vpack.c.bf16 %v416, %v415
        %v418 = vld [vmem:[%s5] sm:$0xf]
        %v419 = vld [vmem:[%s5 + $0x4] sm:$0xf]
        %v420 = vld [vmem:[%s5 + $0x8] sm:$0xf]
        %v421 = vld [vmem:[%s5 + $0xc] sm:$0xf]
        %v422 = vld [vmem:[%s5 + $0x10] sm:$0xf]
        %v423 = vld [vmem:[%s5 + $0x14] sm:$0xf]
        %v424 = vld [vmem:[%s5 + $0x18] sm:$0xf]
        %v425 = vld [vmem:[%s5 + $0x1c] sm:$0xf]
        %v426 = vld [vmem:[%s6] sm:$0x1]
        %v428 = vperm.slane %v426, 0
        %v438 = vunpack.c.l.b16 %v418
        %v439 = vunpack.c.l.b16 %v419
        %v440 = vunpack.c.l.b16 %v420
        %v441 = vunpack.c.l.b16 %v421
        %v442 = vunpack.c.l.b16 %v422
        %v443 = vunpack.c.l.b16 %v423
        %v444 = vunpack.c.l.b16 %v424
        %v445 = vunpack.c.l.b16 %v425
        %v446 = vpack.c.b16 %v439, %v438
        %v447 = vpack.c.b16 %v441, %v440
        %v448 = vpack.c.b16 %v443, %v442
        %v449 = vpack.c.b16 %v445, %v444
        %v455 = vsel %vm397, %v417, 0
        %457 = vmatpush.bf16.msra.mxu0 0
        %458 = vmatpush.bf16.msra.mxu0 0
        %459 = vmatpush.bf16.msra.mxu0 0
        %460 = vmatpush.bf16.msra.mxu0 0
        %461 = vmatpush.bf16.msra.mxu0 %v449
        %462 = vmatpush.bf16.msra.mxu0 %v448
        %463 = vmatpush.bf16.msra.mxu0 %v447
        %464 = vmatpush.bf16.msra.mxu0 %v446
        %465 = vmatmul.bf16.gmra.mxu0 %v455
        %v466 = vpop.f32.mrf.mxu0
        %v467 = vadd.f32 %v428, %v466
        %v468 = vpop.f32.mrf.mxu0
        %v469 = vadd.f32 %v428, %v468
        %470 = vdwg.mxu0
        %vm471 = vcmask 130048
        %472 = vst.msk [vmem:[%s314] sm:$0xff] %vm471, %v467
        %473 = vst.msk [vmem:[%s314 + $0x8] sm:$0xff] %vm471, %v469
        %s474 = smul.u32 2, %s20
        %p475 = scmp.lt.s32.totalorder %s474, 3
        %s476 = scalar_select %p475, %s474, 3
        %s477 = smul.addr %s476, 8
        %s478 = scalar_lea.vmem %s7, %s477
        // Predicated region
        $region57: #{tpu_custom_call.1} parent=47 // pred_check
          %p479 = pneg %p190
        $region58: #{tpu_custom_call.1} parent=47 // pred_check_branch
          %481 = sbr.rel (%p479) target = $region60
        $region59: #{tpu_custom_call.1} parent=47 // pred_region
          %s482 = smul.u32 2, %s20
        $region60: #{tpu_custom_call.1} parent=47 // pred_fallthru
          _
      $region48: #{tpu_custom_call.1} parent=5 // pred_fallthru
        _
      %p483 = scmp.le.s32.totalorder 2, %s15
      // Predicated region
      $region61: #{tpu_custom_call.1} parent=5 // pred_check
        %p484 = pneg %p483
      $region62: #{tpu_custom_call.1} parent=5 // pred_check_branch
        %486 = sbr.rel (%p484) target = $region64
      $region63: #{tpu_custom_call.1} parent=5 // pred_region
        %s487 = ssub.s32 %s15, 2
        // Predicated region
        $region65: #{tpu_custom_call.1} parent=63 // pred_check
          %p488 = pneg %p196
        $region66: #{tpu_custom_call.1} parent=63 // pred_check_branch
          %490 = sbr.rel (%p488) target = $region68
        $region67: #{tpu_custom_call.1} parent=63 // pred_region
          %s491 = smul.u32 2, %s21
          %p492 = scmp.lt.s32.totalorder %s491, 3
          %s493 = scalar_select %p492, %s491, 3
          %s494 = smul.addr %s493, 8
          %s495 = scalar_lea.vmem %s7, %s494
        $region68: #{tpu_custom_call.1} parent=63 // pred_fallthru
          _
      $region64: #{tpu_custom_call.1} parent=5 // pred_fallthru
        _
    $region6: #{tpu_custom_call.1} parent=1 // loop_footer
      %s19 = sadd.s32 1, %s15
    $region7: #{tpu_custom_call.1} parent=1 // loop_footer_branch
      %14 = sbr.rel target = $region3
    $region8: #{tpu_custom_call.1} parent=1 // loop_exit
      _
    %496 = vsyncpa [#allocation3], 1
    %s497 = scalar_lea.sflag [#allocation3], 1
    %498 = vsyncpa %s497, 1
    %499 = vsyncpa [#allocation5], 1

</llo_original>
